<compile_context>
chip_gen: v6e
topology: v6e:2x2x1
jax: 0.10.0
libtpu: 0.0.40
codegen_flags: <defaults>
</compile_context>

<pallas_src>
import functools
import math

import jax
import jax.numpy as jnp
from jax.experimental import pallas as pl
from jax.experimental.pallas import tpu as pltpu


def _pe_add_kernel(div_ref, phase_ref, x_ref, o_ref, *, tile_n: int, inv_sqrt_c: float):
    """Add sinusoidal PE to one (tile_n, tile_l) tile of the lane-dense x view.

    div_ref  : (1, tile_l) f32 -- div[(l % C) // 2] for the current lane tile
    phase_ref: (1, tile_l) f32 -- ((l % C) % 2) * pi/2 for the current lane tile
    x_ref    : (tile_n, tile_l) x.dtype
    o_ref    : (tile_n, tile_l) x.dtype
    """
    i = pl.program_id(0)
    tn, tl = x_ref.shape

    # Absolute sequence position per row (int iota + block offset, cast to f32).
    pos = (jax.lax.broadcasted_iota(jnp.int32, (tn, tl), 0) + i * tile_n).astype(jnp.float32)

    # Single sin with a per-lane phase offset: sin(a + pi/2) == cos(a).
    pe = jnp.sin(pos * div_ref[...] + phase_ref[...])

    o_ref[...] = (x_ref[...].astype(jnp.float32) + pe * inv_sqrt_c).astype(o_ref.dtype)


def positional_embedding_forward(
    x: jax.Array, channels: int, *, target_block_bytes: int = 2 << 20
) -> jax.Array:
    """Pallas equivalent of PositionalEmbedding.forward for 2-D (N, C) or 3-D (N, B, C) x."""
    assert x.shape[-1] == channels
    assert channels % 2 == 0, "channels must be even (same restriction as the torch module)"
    assert x.ndim in (2, 3)

    orig_shape = x.shape
    n = x.shape[0]
    b = 1 if x.ndim == 2 else x.shape[1]
    lanes = b * channels
    x2 = x.reshape(n, lanes)  # lane-dense 2-D view; lane l -> (batch l // C, chan l % C)

    # Host-side buffers (mirrors the torch __init__): div per channel pair and a
    # phase row selecting sin (even chan) vs cos (odd chan), tiled B times along lanes.
    i_pos = jnp.arange(0, channels, 2, dtype=jnp.float32)
    div = jnp.exp(-i_pos / channels * math.log(10000.0))                 # (C//2,)
    div_c = jnp.repeat(div, 2)                                           # (C,)   div[c//2]
    phase_c = (jnp.arange(channels) % 2).astype(jnp.float32) * (math.pi / 2.0)
    div_row = jnp.tile(div_c, b).reshape(1, lanes)                       # (1, L)
    phase_row = jnp.tile(phase_c, b).reshape(1, lanes)                   # (1, L)

    inv_sqrt_c = 1.0 / math.sqrt(channels)
    itemsize = jnp.dtype(x.dtype).itemsize

    # --- Tile selection -------------------------------------------------------
    min_rows = 8
    if lanes * itemsize * min_rows > target_block_bytes and lanes > 128:
        # Rows are extremely wide: tile the lane axis too (multiple of 128).
        tile_l = max(128, (target_block_bytes // (min_rows * itemsize) // 128) * 128)
        tile_n = min_rows
    else:
        tile_l = lanes
        row_bytes = max(lanes * itemsize, 1)
        target_rows = max(1, target_block_bytes // row_bytes)
        if target_rows >= n:
            tile_n = n                       # whole array in one block
        else:
            tile_n = max(8, (target_rows // 8) * 8)

    grid = (pl.cdiv(n, tile_n), pl.cdiv(lanes, tile_l))

    kernel = functools.partial(_pe_add_kernel, tile_n=tile_n, inv_sqrt_c=inv_sqrt_c)

    cost = pl.CostEstimate(
        flops=4 * n * lanes,
        transcendentals=n * lanes,
        bytes_accessed=2 * n * lanes * itemsize + 2 * lanes * 4,
    )

    out2 = pl.pallas_call(
        kernel,
        out_shape=jax.ShapeDtypeStruct((n, lanes), x.dtype),
        grid_spec=pltpu.PrefetchScalarGridSpec(
            num_scalar_prefetch=0,
            grid=grid,
            in_specs=[
                pl.BlockSpec((1, tile_l), lambda i, j: (0, j)),          # div row
                pl.BlockSpec((1, tile_l), lambda i, j: (0, j)),          # phase row
                pl.BlockSpec((tile_n, tile_l), lambda i, j: (i, j)),     # x tile
            ],
            out_specs=pl.BlockSpec((tile_n, tile_l), lambda i, j: (i, j)),
        ),
        compiler_params=pltpu.CompilerParams(
            dimension_semantics=("parallel", "parallel")),
        cost_estimate=cost,
    )(div_row, phase_row, x2)

    return out2.reshape(orig_shape)


def _reference_forward(x: jnp.ndarray, channels: int) -> jnp.ndarray:
    """Pure-JAX reference mirroring the PyTorch module."""
    n = x.shape[0]
    i_pos = jnp.arange(0, channels, 2, dtype=jnp.float32)
    div = jnp.exp(-i_pos / channels * math.log(10000.0))
    position = jnp.arange(0, n, dtype=jnp.float32)[:, None]
    pe = jnp.zeros((n, channels), dtype=jnp.float32)
    pe = pe.at[:, 0::2].set(jnp.sin(position * div[None, :]))
    pe = pe.at[:, 1::2].set(jnp.cos(position * div[None, :]))
    if x.ndim == 3:
        pe = pe[:, None, :]
    return x + pe / math.sqrt(channels)


if __name__ == "__main__":
    key = jax.random.PRNGKey(0)
    k3, k2, k4, k5 = jax.random.split(key, 4)

    # 1) 3-D case (N, B, C) -- single block.
    N, B, C = 16, 2, 32
    x3 = jax.random.normal(k3, (N, B, C), dtype=jnp.float32)
    out3 = jax.block_until_ready(positional_embedding_forward(x3, C))
    ref3 = _reference_forward(x3, C)
    assert out3.shape == x3.shape and out3.dtype == x3.dtype
    assert jnp.allclose(out3, ref3, atol=1e-5, rtol=1e-5), "3-D mismatch vs reference"

    # 2) 2-D case (N, C) -- single block.
    x2 = jax.random.normal(k2, (16, 32), dtype=jnp.float32)
    out2 = jax.block_until_ready(positional_embedding_forward(x2, 32))
    ref2 = _reference_forward(x2, 32)
    assert out2.shape == x2.shape and out2.dtype == x2.dtype
    assert jnp.allclose(out2, ref2, atol=1e-5, rtol=1e-5), "2-D mismatch vs reference"

    # 3) Multi-block over rows (small target block size forces grid_n > 1).
    x4 = jax.random.normal(k4, (128, 2, 64), dtype=jnp.float32)
    out4 = jax.block_until_ready(
        positional_embedding_forward(x4, 64, target_block_bytes=8 * 1024))
    ref4 = _reference_forward(x4, 64)
    assert jnp.allclose(out4, ref4, atol=5e-5, rtol=1e-5), "row-tiled mismatch vs reference"

    # 4) Row + lane tiling path (wide rows relative to the tiny target block).
    x5 = jax.random.normal(k5, (64, 2, 128), dtype=jnp.float32)
    out5 = jax.block_until_ready(
        positional_embedding_forward(x5, 128, target_block_bytes=4 * 1024))
    ref5 = _reference_forward(x5, 128)
    assert jnp.allclose(out5, ref5, atol=5e-5, rtol=1e-5), "lane-tiled mismatch vs reference"

    print("KERNEL_OK")
</pallas_src>

<mosaic_0001>
module attributes {stable_mosaic.version = 11 : i64} {
  func.func @_pe_add_kernel(%arg0: i32, %arg1: i32, %arg2: memref<1x64xf32, #tpu.memory_space<vmem>>, %arg3: memref<1x64xf32, #tpu.memory_space<vmem>>, %arg4: memref<16x64xf32, #tpu.memory_space<vmem>>, %arg5: memref<16x64xf32, #tpu.memory_space<vmem>>) attributes {dimension_semantics = [#tpu.dimension_semantics<parallel>, #tpu.dimension_semantics<parallel>], iteration_bounds = array<i64: 1, 1>, scalar_prefetch = 0 : i64, scratch_operands = 0 : i64, tpu.core_type = #tpu.core_type<tc>, window_params = [{transform_indices = @transform_0, window_bounds = array<i64: 1, 64>}, {transform_indices = @transform_1, window_bounds = array<i64: 1, 64>}, {transform_indices = @transform_2, window_bounds = array<i64: 16, 64>}, {transform_indices = @transform_3, window_bounds = array<i64: 16, 64>}]} {
    %0 = tpu.iota {dimensions = array<i32: 0>} : vector<16x64xi32>
    %c16_i32 = arith.constant 16 : i32
    %1 = arith.muli %arg0, %c16_i32 : i32
    %2 = vector.broadcast %1 : i32 to vector<16x64xi32>
    %3 = arith.addi %0, %2 : vector<16x64xi32>
    %4 = arith.sitofp %3 : vector<16x64xi32> to vector<16x64xf32>
    %c0 = arith.constant 0 : index
    %c0_0 = arith.constant 0 : index
    %5 = vector.load %arg2[%c0, %c0_0] : memref<1x64xf32, #tpu.memory_space<vmem>>, vector<1x64xf32>
    %6 = vector.broadcast %5 : vector<1x64xf32> to vector<16x64xf32>
    %7 = arith.mulf %4, %6 : vector<16x64xf32>
    %c0_1 = arith.constant 0 : index
    %c0_2 = arith.constant 0 : index
    %8 = vector.load %arg3[%c0_1, %c0_2] : memref<1x64xf32, #tpu.memory_space<vmem>>, vector<1x64xf32>
    %9 = vector.broadcast %8 : vector<1x64xf32> to vector<16x64xf32>
    %10 = arith.addf %7, %9 : vector<16x64xf32>
    %11 = math.sin %10 : vector<16x64xf32>
    %c0_3 = arith.constant 0 : index
    %c0_4 = arith.constant 0 : index
    %12 = vector.load %arg4[%c0_3, %c0_4] : memref<16x64xf32, #tpu.memory_space<vmem>>, vector<16x64xf32>
    %cst = arith.constant 0.176776692 : f32
    %13 = vector.broadcast %cst : f32 to vector<16x64xf32>
    %14 = arith.mulf %11, %13 : vector<16x64xf32>
    %15 = arith.addf %12, %14 : vector<16x64xf32>
    %c0_5 = arith.constant 0 : index
    %c0_6 = arith.constant 0 : index
    %16 = vector.load %arg5[%c0_5, %c0_6] : memref<16x64xf32, #tpu.memory_space<vmem>>, vector<16x64xf32>
    tpu.vector_store %arg5[%c0_5, %c0_6], %15 {strides = array<i32>} : memref<16x64xf32, #tpu.memory_space<vmem>>, vector<16x64xf32>,
    return
  }
  func.func @transform_0(%arg0: i32, %arg1: i32) -> (i32, i32) {
    %c0_i32 = arith.constant 0 : i32
    %c0_i32_0 = arith.constant 0 : i32
    return %c0_i32, %arg1 : i32, i32
  }
  func.func @transform_1(%arg0: i32, %arg1: i32) -> (i32, i32) {
    %c0_i32 = arith.constant 0 : i32
    %c0_i32_0 = arith.constant 0 : i32
    return %c0_i32, %arg1 : i32, i32
  }
  func.func @transform_2(%arg0: i32, %arg1: i32) -> (i32, i32) {
    %c0_i32 = arith.constant 0 : i32
    return %arg0, %arg1 : i32, i32
  }
  func.func @transform_3(%arg0: i32, %arg1: i32) -> (i32, i32) {
    %c0_i32 = arith.constant 0 : i32
    return %arg0, %arg1 : i32, i32
  }
}

</mosaic_0001>

<llo_original>
// kernel: tpu_custom_call.1
$region0: #{tpu_custom_call.1}
  #allocation0 [shape = 'u32[]', space=smem, size = 0x4, offset = 0x4, fixed_abs, tag = 'smem constant byte address 0x4 - core index']
  #allocation1 [shape = 'u32[144,128]{1,0:T(1,128)}', space=vmem, size = 0x12000, scoped, tag = 'internal scratch']
  %s0 = inlined_call_operand.hbm [shape: f32[1,64], index: 0, kind: input, shape index: {}]
  %s1 = inlined_call_operand.vmem [shape: f32[1,64], index: 1, kind: input, shape index: {}]
  %s2 = inlined_call_operand.hbm [shape: f32[16,64], index: 2, kind: input, shape index: {}]
  %s3 = inlined_call_operand.hbm [shape: f32[16,64], index: 3, kind: output, shape index: {}]
  %s4 = sld [smem:[#allocation0]]
  $region30: #{tpu_custom_call.1} parent=0
    _
  %s6 = ssub.s32 1, %s4
  %s7 = scalar_select 0, %s6, %s4
  $region1: #{tpu_custom_call.1} parent=0
    #allocation2 [shape = 'u8[512]{0}', space=vmem, size = 0x400, scoped, tag = 'input window, operand 0, single buffered']
    #allocation3 [shape = 's32[1]{0}', space=sflag, size = 0x4, scoped, tag = 'scoped memory for tpu_custom_call.1']
    #allocation4 [shape = 's32[1]{0}', space=sflag, size = 0x4, scoped, tag = 'scoped memory for tpu_custom_call.1']
    #allocation5 [shape = 'u8[8192]{0}', space=vmem, size = 0x2000, scoped, tag = 'input window, operand 2, single buffered']
    #allocation6 [shape = 's32[1]{0}', space=sflag, size = 0x4, scoped, tag = 'scoped memory for tpu_custom_call.1']
    #allocation7 [shape = 'u8[8192]{0}', space=vmem, size = 0x2000, scoped, tag = 'output window, operand 0, single buffered']
    %8 = vsyncpa [#allocation3], 0
    %9 = vsyncpa [#allocation6], 0
    %10 = vsyncpa [#allocation4], 0
    // Predicated region
    $region2: #{tpu_custom_call.1} parent=1 // pred_check
      _
    $region3: #{tpu_custom_call.1} parent=1 // pred_check_branch
      %12 = sbr.rel (0) target = $region5
    $region4: #{tpu_custom_call.1} parent=1 // pred_region
      %s14 = ssub.s32 16, 16
      %15 = vsyncadd [#allocation3], %s14
      %s17 = sshll.u32 [#allocation2], 4
      %s18 = int_to_ptr.vmem [resolvable:$true] %s17
      %20 = dma.hbm_to_vmem [thread:$0]  %s0, 16, %s18, [#allocation3]
    $region5: #{tpu_custom_call.1} parent=1 // pred_fallthru
      _
    // Predicated region
    $region6: #{tpu_custom_call.1} parent=1 // pred_check
      _
    $region7: #{tpu_custom_call.1} parent=1 // pred_check_branch
      %22 = sbr.rel (0) target = $region9
    $region8: #{tpu_custom_call.1} parent=1 // pred_region
      _
    $region9: #{tpu_custom_call.1} parent=1 // pred_fallthru
      _
    // Predicated region
    $region10: #{tpu_custom_call.1} parent=1 // pred_check
      _
    $region11: #{tpu_custom_call.1} parent=1 // pred_check_branch
      %24 = sbr.rel (0) target = $region13
    $region12: #{tpu_custom_call.1} parent=1 // pred_region
      %s26 = ssub.s32 256, 256
      %27 = vsyncadd [#allocation6], %s26
      %s28 = sshll.u32 [#allocation5], 4
      %s29 = int_to_ptr.vmem [resolvable:$true] %s28
      %34 = dma.hbm_to_vmem [thread:$0]  %s2, 256, %s29, [#allocation6], 128, 128, 8
    $region13: #{tpu_custom_call.1} parent=1 // pred_fallthru
      _
    // Predicated region
    $region14: #{tpu_custom_call.1} parent=1 // pred_check
      _
    $region15: #{tpu_custom_call.1} parent=1 // pred_check_branch
      %36 = sbr.rel (0) target = $region17
    $region16: #{tpu_custom_call.1} parent=1 // pred_region
      %37 = dma.done [#allocation3], 16
    $region17: #{tpu_custom_call.1} parent=1 // pred_fallthru
      _
    // Predicated region
    $region18: #{tpu_custom_call.1} parent=1 // pred_check
      _
    $region19: #{tpu_custom_call.1} parent=1 // pred_check_branch
      %39 = sbr.rel (0) target = $region21
    $region20: #{tpu_custom_call.1} parent=1 // pred_region
      %40 = dma.done [#allocation6], 256
    $region21: #{tpu_custom_call.1} parent=1 // pred_fallthru
      _
    %v41 = vlaneseq
    %v42 = vshrl.u32 %v41, 7
    %v43 = vadd.s32 %v42, 8
    %s44 = smul.u32 0, 16
    %v45 = vstv %s44
    %v46 = vadd.s32 %v42, %v45
    %v47 = vadd.s32 %v43, %v45
    %v48 = vcvt.s32.f32 %v46
    %v49 = vcvt.s32.f32 %v47
    %v50 = vld [vmem:[#allocation2] sm:$0x1]
    %v52 = vlaneseq
    %v53 = vshrl.u32 %v52, 7
    %v54 = vsub.s32 0, %v53
    %v55 = vrot.slane %v50, %v54
    %v57 = vmul.f32 %v48, %v55
    %v58 = vmul.f32 %v49, %v55
    %v59 = vld [vmem:[%s1] sm:$0x1]
    %v61 = vlaneseq
    %v62 = vshrl.u32 %v61, 7
    %v63 = vsub.s32 0, %v62
    %v64 = vrot.slane %v59, %v63
    %v66 = vadd.f32 %v57, %v64
    %v67 = vadd.f32 %v58, %v64
    %v68 = vand.u32 2147483647, %v66
    %vm69 = vcmp.le.f32.partialorder %v68, 0.7853982
    %vm70 = vcmp.lt.s32.totalorder %v66, 0
    %v71 = vand.u32 %v66, 2139095040
    %v72 = vshrl.u32 %v71, 23
    %v73 = vsub.s32 %v72, 127
    %v74 = vand.u32 2147483647, %v66
    %v75 = vand.u32 %v74, 8388607
    %v76 = vor.u32 %v75, 8388608
    %v77 = vsub.s32 0, %v76
    %v78 = vadd.s32 %v73, 1
    %vm79 = vcmp.gt.s32.totalorder %v78, 0
    %v80 = vsel %vm79, %v78, 0
    %v81 = vshrl.u32 %v80, 5
    %v82 = vand.u32 %v80, 31
    %v83 = vsub.s32 32, %v82
    %v84 = vshrl.u32 683565275, %v83
    %v85 = vshll.u32 683565275, %v82
    %v86 = vshrl.u32 2475754826, %v83
    %v87 = vor.u32 %v85, %v86
    %v88 = vshll.u32 2475754826, %v82
    %v89 = vshrl.u32 2131351028, %v83
    %v90 = vor.u32 %v88, %v89
    %v91 = vshll.u32 2131351028, %v82
    %v92 = vshrl.u32 2102212464, %v83
    %v93 = vor.u32 %v91, %v92
    %v94 = vshll.u32 2102212464, %v82
    %v95 = vshrl.u32 920167782, %v83
    %v96 = vor.u32 %v94, %v95
    %v97 = vshll.u32 920167782, %v82
    %v98 = vshrl.u32 1326507024, %v83
    %v99 = vor.u32 %v97, %v98
    %vm100 = vcmp.lt.s32.totalorder %v81, 1
    %vm101 = vcmp.lt.s32.totalorder %v81, 2
    %vm102 = vcmp.lt.s32.totalorder %v81, 3
    %vm103 = vcmp.lt.s32.totalorder %v81, 4
    %v104 = vsel %vm100, %v84, %v87
    %v105 = vsel %vm103, %v93, 2102212464
    %v106 = vsel %vm102, %v90, %v105
    %v107 = vsel %vm101, %v104, %v106
    %v108 = vsel %vm100, %v87, %v90
    %v109 = vsel %vm103, %v96, 920167782
    %v110 = vsel %vm102, %v93, %v109
    %v111 = vsel %vm101, %v108, %v110
    %v112 = vsel %vm100, %v90, %v93
    %v113 = vsel %vm103, %v99, 1326507024
    %v114 = vsel %vm102, %v96, %v113
    %v115 = vsel %vm101, %v112, %v114
    %v116 = vshll.u32 %v76, 8
    %v117 = vmul.u32.u64.compose %v116, %v115
    %v118 = vextract.low.u32 %v117
    %v119 = vextract.high.u32 %v117
    %v120 = vmul.u32.u64.compose %v116, %v111
    %v121 = vextract.low.u32 %v120
    %v122 = vextract.high.u32 %v120
    %v123 = vmul.u32 %v116, %v107
    %v124 = vadd.s32 %v119, %v121
    %vm125 = vc.u32 %v119, %v121
    %v126 = vadd.s32 %v122, 1
    %v127 = vsel %vm125, %v126, %v122
    %v128 = vadd.s32 %v123, %v127
    %v129 = vadd.s32 %v128, 536870912
    %v130 = vshrl.u32 %v129, 30
    %v131 = vshll.u32 %v130, 30
    %v132 = vsub.s32 %v128, %v131
    %vm133 = vcmp.lt.s32.totalorder %v132, 0
    %v134 = vsub.s32 0, %v132
    %v135 = vsel %vm133, %v134, %v132
    %v136 = vclz %v135
    %v137 = vsub.s32 %v136, 2
    %vm138 = vcmp.gt.s32.totalorder 0, %v137
    %v139 = vsel %vm138, 0, %v137
    %v140 = vsub.s32 32, %v139
    %v141 = vshll.u32 %v132, %v139
    %v142 = vshrl.u32 %v124, %v140
    %v143 = vor.u32 %v141, %v142
    %v144 = vsub.s32 4294967266, %v139
    %v145 = vadd.s32 %v144, 127
    %v146 = vshll.u32 %v145, 23
    %v147 = vor.u32 4788187, %v146
    %v148 = vand.u32 2147483647, %v147
    %v150 = vcvt.s32.f32 %v143
    %v151 = vmul.f32 %v150, %v148
    %v152 = vxor.u32 %v151, 2147483648
    %v153 = vsel %vm70, %v152, %v151
    %v154 = vsub.s32 4, %v130
    %v155 = vsel %vm70, %v154, %v130
    %v156 = vsel %vm69, %v66, %v153
    %v157 = vsel %vm69, 0, %v155
    %v158 = vcosq.f32.pop %v156
    %v159 = vsinq.f32.pop %v156
    %vm160 = vweird.f32 %v66
    %v161 = vadd.s32 %v157, 3
    %v162 = vand.u32 %v161, 3
    %vm163 = vcmp.lt.s32.totalorder %v162, 2
    %vm164 = vcmp.eq.s32.totalorder %v162, 0
    %v165 = vxor.u32 %v159, 2147483648
    %v166 = vsel %vm164, %v158, %v165
    %vm167 = vcmp.eq.s32.totalorder %v162, 2
    %v168 = vxor.u32 %v158, 2147483648
    %v169 = vsel %vm167, %v168, %v159
    %v170 = vsel %vm163, %v166, %v169
    %v171 = vsel %vm160, nan, %v170
    %v172 = vand.u32 2147483647, %v67
    %vm173 = vcmp.le.f32.partialorder %v172, 0.7853982
    %vm174 = vcmp.lt.s32.totalorder %v67, 0
    %v175 = vand.u32 %v67, 2139095040
    %v176 = vshrl.u32 %v175, 23
    %v177 = vsub.s32 %v176, 127
    %v178 = vand.u32 2147483647, %v67
    %v179 = vand.u32 %v178, 8388607
    %v180 = vor.u32 %v179, 8388608
    %v181 = vsub.s32 0, %v180
    %v182 = vadd.s32 %v177, 1
    %vm183 = vcmp.gt.s32.totalorder %v182, 0
    %v184 = vsel %vm183, %v182, 0
    %v185 = vshrl.u32 %v184, 5
    %v186 = vand.u32 %v184, 31
    %v187 = vsub.s32 32, %v186
    %v188 = vshrl.u32 683565275, %v187
    %v189 = vshll.u32 683565275, %v186
    %v190 = vshrl.u32 2475754826, %v187
    %v191 = vor.u32 %v189, %v190
    %v192 = vshll.u32 2475754826, %v186
    %v193 = vshrl.u32 2131351028, %v187
    %v194 = vor.u32 %v192, %v193
    %v195 = vshll.u32 2131351028, %v186
    %v196 = vshrl.u32 2102212464, %v187
    %v197 = vor.u32 %v195, %v196
    %v198 = vshll.u32 2102212464, %v186
    %v199 = vshrl.u32 920167782, %v187
    %v200 = vor.u32 %v198, %v199
    %v201 = vshll.u32 920167782, %v186
    %v202 = vshrl.u32 1326507024, %v187
    %v203 = vor.u32 %v201, %v202
    %vm204 = vcmp.lt.s32.totalorder %v185, 1
    %vm205 = vcmp.lt.s32.totalorder %v185, 2
    %vm206 = vcmp.lt.s32.totalorder %v185, 3
    %vm207 = vcmp.lt.s32.totalorder %v185, 4
    %v208 = vsel %vm204, %v188, %v191
    %v209 = vsel %vm207, %v197, 2102212464
    %v210 = vsel %vm206, %v194, %v209
    %v211 = vsel %vm205, %v208, %v210
    %v212 = vsel %vm204, %v191, %v194
    %v213 = vsel %vm207, %v200, 920167782
    %v214 = vsel %vm206, %v197, %v213
    %v215 = vsel %vm205, %v212, %v214
    %v216 = vsel %vm204, %v194, %v197
    %v217 = vsel %vm207, %v203, 1326507024
    %v218 = vsel %vm206, %v200, %v217
    %v219 = vsel %vm205, %v216, %v218
    %v220 = vshll.u32 %v180, 8
    %v221 = vmul.u32.u64.compose %v220, %v219
    %v222 = vextract.low.u32 %v221
    %v223 = vextract.high.u32 %v221
    %v224 = vmul.u32.u64.compose %v220, %v215
    %v225 = vextract.low.u32 %v224
    %v226 = vextract.high.u32 %v224
    %v227 = vmul.u32 %v220, %v211
    %v228 = vadd.s32 %v223, %v225
    %vm229 = vc.u32 %v223, %v225
    %v230 = vadd.s32 %v226, 1
    %v231 = vsel %vm229, %v230, %v226
    %v232 = vadd.s32 %v227, %v231
    %v233 = vadd.s32 %v232, 536870912
    %v234 = vshrl.u32 %v233, 30
    %v235 = vshll.u32 %v234, 30
    %v236 = vsub.s32 %v232, %v235
    %vm237 = vcmp.lt.s32.totalorder %v236, 0
    %v238 = vsub.s32 0, %v236
    %v239 = vsel %vm237, %v238, %v236
    %v240 = vclz %v239
    %v241 = vsub.s32 %v240, 2
    %vm242 = vcmp.gt.s32.totalorder 0, %v241
    %v243 = vsel %vm242, 0, %v241
    %v244 = vsub.s32 32, %v243
    %v245 = vshll.u32 %v236, %v243
    %v246 = vshrl.u32 %v228, %v244
    %v247 = vor.u32 %v245, %v246
    %v248 = vsub.s32 4294967266, %v243
    %v249 = vadd.s32 %v248, 127
    %v250 = vshll.u32 %v249, 23
    %v251 = vor.u32 4788187, %v250
    %v252 = vand.u32 2147483647, %v251
    %v254 = vcvt.s32.f32 %v247
    %v255 = vmul.f32 %v254, %v252
    %v256 = vxor.u32 %v255, 2147483648
    %v257 = vsel %vm174, %v256, %v255
    %v258 = vsub.s32 4, %v234
    %v259 = vsel %vm174, %v258, %v234
    %v260 = vsel %vm173, %v67, %v257
    %v261 = vsel %vm173, 0, %v259
    %v262 = vcosq.f32.pop %v260
    %v263 = vsinq.f32.pop %v260
    %vm264 = vweird.f32 %v67
    %v265 = vadd.s32 %v261, 3
    %v266 = vand.u32 %v265, 3
    %vm267 = vcmp.lt.s32.totalorder %v266, 2
    %vm268 = vcmp.eq.s32.totalorder %v266, 0
    %v269 = vxor.u32 %v263, 2147483648
    %v270 = vsel %vm268, %v262, %v269
    %vm271 = vcmp.eq.s32.totalorder %v266, 2
    %v272 = vxor.u32 %v262, 2147483648
    %v273 = vsel %vm271, %v272, %v263
    %v274 = vsel %vm267, %v270, %v273
    %v275 = vsel %vm264, nan, %v274
    %v276 = vld [vmem:[#allocation5] sm:$0xff]
    %v277 = vld [vmem:[#allocation5 + $0x8] sm:$0xff]
    %v278 = vmul.f32 %v171, 0.17677669
    %v279 = vmul.f32 %v275, 0.17677669
    %v280 = vadd.f32 %v276, %v278
    %v281 = vadd.f32 %v277, %v279
    %vm282 = vcmask 523264
    %283 = vst.msk [vmem:[#allocation7] sm:$0xff] %vm282, %v280
    %284 = vst.msk [vmem:[#allocation7 + $0x8] sm:$0xff] %vm282, %v281
    // Predicated region
    $region22: #{tpu_custom_call.1} parent=1 // pred_check
      _
    $region23: #{tpu_custom_call.1} parent=1 // pred_check_branch
      %286 = sbr.rel (0) target = $region25
    $region24: #{tpu_custom_call.1} parent=1 // pred_region
      %s288 = ssub.s32 256, 256
      %289 = vsyncadd [#allocation4], %s288
      %s290 = sshll.u32 [#allocation7], 4
      %s291 = int_to_ptr.vmem [resolvable:$true] %s290
      %296 = dma.vmem_to_hbm [thread:$0]  %s291, 256, %s3, [#allocation4], 128, 128, 8
    $region25: #{tpu_custom_call.1} parent=1 // pred_fallthru
      _
    // Predicated region
    $region26: #{tpu_custom_call.1} parent=1 // pred_check
      _
    $region27: #{tpu_custom_call.1} parent=1 // pred_check_branch
      %298 = sbr.rel (0) target = $region29
    $region28: #{tpu_custom_call.1} parent=1 // pred_region
      %299 = dma.done [#allocation4], 256
    $region29: #{tpu_custom_call.1} parent=1 // pred_fallthru
      _
    %300 = vsyncpa [#allocation3], 1
    %301 = vsyncpa [#allocation6], 1
    %302 = vsyncpa [#allocation4], 1

</llo_original>
